<compile_context>
chip_gen: v5e
topology: v5e:2x2
jax: 0.10.0
libtpu: 0.0.40
codegen_flags: <defaults>
</compile_context>

<pallas_src>
import functools

import jax
import jax.numpy as jnp
import numpy as np
from jax.experimental import pallas as pl
from jax.experimental.pallas import tpu as pltpu


def _cnn_kernel(w_ref, b_ref, col_ref, x_ref, o_ref, *, width, compute_dtype):
    """One grid step: a tile of whole images, each flattened to H*W lanes.

    w_ref  : SMEM f32[2, 9]      conv weights (out_channel, 3x3 tap row-major)
    b_ref  : SMEM f32[2]         conv bias
    col_ref: VMEM i32[1, H*W]    column index of each lane within its image row
    x_ref  : VMEM [bB, H*W]      input images (row-major flattened)
    o_ref  : VMEM [bB, H*W]      output images
    """
    cdt = compute_dtype
    x = x_ref[...].astype(cdt)                    # [bB, HW] in compute dtype
    bB, HW = x.shape
    W = width

    # Hoist all scalar parameter reads out of the MAC chain (SMEM -> sregs)
    # and cast once so the vector*scalar MACs stay in the compute dtype
    # (an f32 scalar would silently upcast the whole bf16 chain).
    w0 = [w_ref[0, t].astype(cdt) for t in range(9)]   # channel 0 (k1) taps
    w1 = [w_ref[1, t].astype(cdt) for t in range(9)]   # channel 1 (k2) taps
    b0 = b_ref[0].astype(cdt)
    b1 = b_ref[1].astype(cdt)

    def lane_roll(v, s):
        s = s % HW
        return v if s == 0 else pltpu.roll(v, s, axis=1)

    # First / last column masks (per image row), from the precomputed indices.
    col = col_ref[...]                            # i32 [1, HW]
    first_col = col == 0
    last_col = col == (W - 1)

    # Column-shifted copies with per-image circular wrap:
    #   c_left [i, j] = x[i, (j - 1) mod W]
    #   c_right[i, j] = x[i, (j + 1) mod W]
    # A single flattened roll wraps into the neighbouring image row, so the
    # first/last column is patched with a second roll (rolls run on the XLU,
    # the two selects on the VPU).
    c_left = jnp.where(first_col, lane_roll(x, 1 - W), lane_roll(x, 1))
    c_right = jnp.where(last_col, lane_roll(x, W - 1), lane_roll(x, -1))
    col_shifted = {0: c_left, 1: x, 2: c_right}   # indexed by dj

    # 3x3 circular convolution as 9 rolled-tap MACs.  Row shifts are exact
    # flattened rolls by multiples of W (mod H*W wraps the rows circularly).
    # One rolled patch feeds both output channels.  Accumulators start from
    # the first tap (no materialized bias broadcast).
    acc0 = acc1 = None
    for di in range(3):
        row_shift = (1 - di) * W
        for dj in range(3):
            patch = lane_roll(col_shifted[dj], row_shift)
            t = di * 3 + dj
            if acc0 is None:
                acc0 = patch * w0[t]
                acc1 = patch * w1[t]
            else:
                acc0 = acc0 + patch * w0[t]
                acc1 = acc1 + patch * w1[t]

    # Vector + scalar bias add, then the pointwise epilogue.
    a0 = jnp.abs(acc0 + b0)                       # |k1|
    a1 = jnp.abs(acc1 + b1)                       # |k2|
    p = 0.6 - a1 + x * (a1 - a0)

    if cdt == jnp.float32:
        # Exact path (v5e and older, and for tight validation).
        out = jax.nn.sigmoid(p)
    else:
        # exp and approx reciprocal both run on the EUP slot (idle here),
        # keeping the epilogue off the saturated VALU.
        e = jnp.exp(-p)                                        # EUP (bf16 ok on v6e/v7x)
        out = pl.reciprocal(1.0 + e.astype(jnp.float32), approx=True)
    o_ref[...] = out.astype(o_ref.dtype)


def _device_defaults():
    """Generation-aware compute dtype, tile budget and VMEM limit."""
    kind = ""
    try:
        kind = jax.devices()[0].device_kind.lower()
    except Exception:  # pragma: no cover - defensive only
        pass
    if any(v in kind for v in ("v2", "v3", "v4", "v5")):
        # No bf16 VALU/EUP before v6; 128 MiB physical VMEM -> bigger tiles.
        return {"compute_dtype": jnp.float32,
                "tile_budget_bytes": 2 << 20,
                "vmem_limit_bytes": 64 << 20}
    if "v6" in kind:
        # bf16 VALU/EUP, 128 MiB physical VMEM.
        return {"compute_dtype": jnp.bfloat16,
                "tile_budget_bytes": 2 << 20,
                "vmem_limit_bytes": 64 << 20}
    # v7x (64 MiB VMEM per TC) and unknown: bf16 math, conservative VMEM.
    return {"compute_dtype": jnp.bfloat16,
            "tile_budget_bytes": 1 << 20,
            "vmem_limit_bytes": 40 << 20}


def _pick_batch_tile(batch, hw, itemsize, budget_bytes):
    """8-aligned batch tile under `budget_bytes`, with >=2 grid steps when
    the batch allows it (keeps both v7x TensorCores busy and gives the
    pipeliner at least one step of DMA/compute overlap everywhere)."""
    bb = max(8, budget_bytes // max(1, hw * itemsize))
    bb = min(bb, batch)
    if batch >= 16:
        bb = min(bb, batch // 2)
    bb = max(8, (bb // 8) * 8)        # sublane-aligned blocks
    return bb


def cnn_forward(x, weight, bias, *, batch_tile=None, compute_dtype=None,
                vmem_limit_bytes=None):
    """
    x     : [B, 1, H, W]   input boards
    weight: [2, 1, 3, 3]   conv weight
    bias  : [2]            conv bias
    returns [B, 1, H, W] = sigmoid(0.6 - |k2| + x * (|k2| - |k1|))
    """
    B, C, H, W = x.shape
    assert C == 1, "CNN module is defined with input_channels=1"
    HW = H * W   # guardrail: HW a multiple of 128 (true for 16/32/64 boards)
                 # keeps stores unmasked; odd boards still work (full-dim block).

    defaults = _device_defaults()
    if compute_dtype is None:
        compute_dtype = defaults["compute_dtype"]
    if vmem_limit_bytes is None:
        vmem_limit_bytes = defaults["vmem_limit_bytes"]

    # Lane-dense layout: each image becomes one contiguous row of H*W lanes.
    # (Pure metadata reshape for NCHW with C == 1 — no HBM round-trip.)
    x_flat = x.reshape(B, HW)
    w_flat = weight.reshape(2, 9).astype(jnp.float32)
    b = bias.astype(jnp.float32)
    col_ids = jnp.asarray(
        (np.arange(HW, dtype=np.int32) % np.int32(W)).reshape(1, HW))

    if batch_tile is None:
        batch_tile = _pick_batch_tile(B, HW, x_flat.dtype.itemsize,
                                      defaults["tile_budget_bytes"])
    assert batch_tile % 8 == 0, "batch_tile must be a multiple of 8"

    # Pad ragged batches up to a multiple of the tile; slice back at the end.
    n_steps = pl.cdiv(B, batch_tile)
    b_padded = n_steps * batch_tile
    if b_padded != B:
        x_flat = jnp.pad(x_flat, ((0, b_padded - B), (0, 0)))

    kernel = functools.partial(_cnn_kernel, width=W, compute_dtype=compute_dtype)
    out_flat = pl.pallas_call(
        kernel,
        out_shape=jax.ShapeDtypeStruct((b_padded, HW), x_flat.dtype),
        grid=(n_steps,),
        in_specs=[
            pl.BlockSpec((2, 9), lambda i: (0, 0),
                         memory_space=pltpu.MemorySpace.SMEM),   # weights
            pl.BlockSpec((2,), lambda i: (0,),
                         memory_space=pltpu.MemorySpace.SMEM),   # bias
            pl.BlockSpec((1, HW), lambda i: (0, 0)),             # column indices
            # v5e knob if profiling shows DMA exposed at tile edges:
            # add pipeline_mode=pl.Buffered(3) to this spec and out_specs.
            pl.BlockSpec((batch_tile, HW), lambda i: (i, 0)),    # input images
        ],
        out_specs=pl.BlockSpec((batch_tile, HW), lambda i: (i, 0)),
        compiler_params=pltpu.CompilerParams(
            # Batch tiles are independent -> v7x's two TensorCores split them.
            dimension_semantics=("parallel",),
            vmem_limit_bytes=vmem_limit_bytes,
        ),
    )(w_flat, b, col_ids, x_flat)

    return out_flat[:B].reshape(B, 1, H, W)


def _reference_forward(x, weight, bias):
    """Pure-JAX reference (lax conv with circular pad) for validation."""
    x2 = x.astype(jnp.float32)
    xp = jnp.pad(x2, ((0, 0), (0, 0), (1, 1), (1, 1)), mode="wrap")
    k = jax.lax.conv_general_dilated(
        xp, weight.astype(jnp.float32),
        window_strides=(1, 1), padding="VALID",
        dimension_numbers=("NCHW", "OIHW", "NCHW"),
    ) + bias.reshape(1, 2, 1, 1)
    k1 = k[:, 0:1]
    k2 = k[:, 1:2]
    p = 0.6 - jnp.abs(k2) + x2 * (jnp.abs(k2) - jnp.abs(k1))
    return jax.nn.sigmoid(p)


if __name__ == "__main__":
    key = jax.random.PRNGKey(0)
    k_x, k_w, k_b = jax.random.split(key, 3)

    B, C, H, W = 16, 1, 16, 16
    x = jax.random.uniform(k_x, (B, C, H, W), dtype=jnp.float32)

    # Deterministic parameter init (PyTorch Conv2d init bounds: 1/sqrt(fan_in)).
    fan_in = 1 * 3 * 3
    bound = 1.0 / np.sqrt(fan_in)
    weight = jax.random.uniform(k_w, (2, 1, 3, 3), minval=-bound, maxval=bound,
                                dtype=jnp.float32)
    bias = jax.random.uniform(k_b, (2,), minval=-bound, maxval=bound,
                              dtype=jnp.float32)

    ref = jax.block_until_ready(_reference_forward(x, weight, bias))

    # 1) Exact f32 path (runs on every TPU generation) — tight tolerance.
    out_f32 = jax.block_until_ready(
        cnn_forward(x, weight, bias, compute_dtype=jnp.float32))
    np.testing.assert_allclose(np.asarray(out_f32), np.asarray(ref),
                               rtol=1e-5, atol=1e-5)
    assert out_f32.shape == (B, C, H, W)

    # 2) Auto path: bf16 MAC chain on v6e/v7x (loosened tolerance for bf16
    #    rounding + approx reciprocal), f32 on v5e and older.
    out_auto = jax.block_until_ready(cnn_forward(x, weight, bias))
    auto_dtype = _device_defaults()["compute_dtype"]
    rtol, atol = ((3e-2, 3e-2) if auto_dtype == jnp.bfloat16 else (1e-5, 1e-5))
    np.testing.assert_allclose(np.asarray(out_auto), np.asarray(ref),
                               rtol=rtol, atol=atol)
    assert out_auto.shape == (B, C, H, W)

    # 3) Ragged batch: exercises wrapper padding + the multi-step pipelined,
    #    "parallel" batch tiling.
    x_odd = x[:10]
    ref_odd = _reference_forward(x_odd, weight, bias)
    out_odd = jax.block_until_ready(
        cnn_forward(x_odd, weight, bias, compute_dtype=jnp.float32,
                    batch_tile=8))
    np.testing.assert_allclose(np.asarray(out_odd), np.asarray(ref_odd),
                               rtol=1e-5, atol=1e-5)
    assert out_odd.shape == (10, C, H, W)

    print("KERNEL_OK")
</pallas_src>

<mosaic_0001>
module attributes {stable_mosaic.version = 11 : i64} {
  func.func @_cnn_kernel(%arg0: i32, %arg1: memref<2x9xf32, #tpu.memory_space<smem>>, %arg2: memref<2xf32, #tpu.memory_space<smem>>, %arg3: memref<1x256xi32, #tpu.memory_space<vmem>>, %arg4: memref<8x256xf32, #tpu.memory_space<vmem>>, %arg5: memref<8x256xf32, #tpu.memory_space<vmem>>) attributes {dimension_semantics = [#tpu.dimension_semantics<parallel>], iteration_bounds = array<i64: 2>, scalar_prefetch = 0 : i64, scratch_operands = 0 : i64, tpu.core_type = #tpu.core_type<tc>, window_params = [{transform_indices = @transform_0, window_bounds = array<i64: 2, 9>}, {transform_indices = @transform_1, window_bounds = array<i64: 2>}, {pipeline_mode = #tpu.pipeline_mode<synchronous>, transform_indices = @transform_2, window_bounds = array<i64: 1, 256>}, {transform_indices = @transform_3, window_bounds = array<i64: 8, 256>}, {transform_indices = @transform_4, window_bounds = array<i64: 8, 256>}]} {
    %c0 = arith.constant 0 : index
    %c0_0 = arith.constant 0 : index
    %0 = vector.load %arg4[%c0, %c0_0] : memref<8x256xf32, #tpu.memory_space<vmem>>, vector<8x256xf32>
    %c0_1 = arith.constant 0 : index
    %c0_2 = arith.constant 0 : index
    %1 = memref.load %arg1[%c0_1, %c0_2] : memref<2x9xf32, #tpu.memory_space<smem>>
    %c0_3 = arith.constant 0 : index
    %c1 = arith.constant 1 : index
    %2 = memref.load %arg1[%c0_3, %c1] : memref<2x9xf32, #tpu.memory_space<smem>>
    %c0_4 = arith.constant 0 : index
    %c2 = arith.constant 2 : index
    %3 = memref.load %arg1[%c0_4, %c2] : memref<2x9xf32, #tpu.memory_space<smem>>
    %c0_5 = arith.constant 0 : index
    %c3 = arith.constant 3 : index
    %4 = memref.load %arg1[%c0_5, %c3] : memref<2x9xf32, #tpu.memory_space<smem>>
    %c0_6 = arith.constant 0 : index
    %c4 = arith.constant 4 : index
    %5 = memref.load %arg1[%c0_6, %c4] : memref<2x9xf32, #tpu.memory_space<smem>>
    %c0_7 = arith.constant 0 : index
    %c5 = arith.constant 5 : index
    %6 = memref.load %arg1[%c0_7, %c5] : memref<2x9xf32, #tpu.memory_space<smem>>
    %c0_8 = arith.constant 0 : index
    %c6 = arith.constant 6 : index
    %7 = memref.load %arg1[%c0_8, %c6] : memref<2x9xf32, #tpu.memory_space<smem>>
    %c0_9 = arith.constant 0 : index
    %c7 = arith.constant 7 : index
    %8 = memref.load %arg1[%c0_9, %c7] : memref<2x9xf32, #tpu.memory_space<smem>>
    %c0_10 = arith.constant 0 : index
    %c8 = arith.constant 8 : index
    %9 = memref.load %arg1[%c0_10, %c8] : memref<2x9xf32, #tpu.memory_space<smem>>
    %c1_11 = arith.constant 1 : index
    %c0_12 = arith.constant 0 : index
    %10 = memref.load %arg1[%c1_11, %c0_12] : memref<2x9xf32, #tpu.memory_space<smem>>
    %c1_13 = arith.constant 1 : index
    %c1_14 = arith.constant 1 : index
    %11 = memref.load %arg1[%c1_13, %c1_14] : memref<2x9xf32, #tpu.memory_space<smem>>
    %c1_15 = arith.constant 1 : index
    %c2_16 = arith.constant 2 : index
    %12 = memref.load %arg1[%c1_15, %c2_16] : memref<2x9xf32, #tpu.memory_space<smem>>
    %c1_17 = arith.constant 1 : index
    %c3_18 = arith.constant 3 : index
    %13 = memref.load %arg1[%c1_17, %c3_18] : memref<2x9xf32, #tpu.memory_space<smem>>
    %c1_19 = arith.constant 1 : index
    %c4_20 = arith.constant 4 : index
    %14 = memref.load %arg1[%c1_19, %c4_20] : memref<2x9xf32, #tpu.memory_space<smem>>
    %c1_21 = arith.constant 1 : index
    %c5_22 = arith.constant 5 : index
    %15 = memref.load %arg1[%c1_21, %c5_22] : memref<2x9xf32, #tpu.memory_space<smem>>
    %c1_23 = arith.constant 1 : index
    %c6_24 = arith.constant 6 : index
    %16 = memref.load %arg1[%c1_23, %c6_24] : memref<2x9xf32, #tpu.memory_space<smem>>
    %c1_25 = arith.constant 1 : index
    %c7_26 = arith.constant 7 : index
    %17 = memref.load %arg1[%c1_25, %c7_26] : memref<2x9xf32, #tpu.memory_space<smem>>
    %c1_27 = arith.constant 1 : index
    %c8_28 = arith.constant 8 : index
    %18 = memref.load %arg1[%c1_27, %c8_28] : memref<2x9xf32, #tpu.memory_space<smem>>
    %c0_29 = arith.constant 0 : index
    %19 = memref.load %arg2[%c0_29] : memref<2xf32, #tpu.memory_space<smem>>
    %c1_30 = arith.constant 1 : index
    %20 = memref.load %arg2[%c1_30] : memref<2xf32, #tpu.memory_space<smem>>
    %c0_31 = arith.constant 0 : index
    %c0_32 = arith.constant 0 : index
    %21 = vector.load %arg3[%c0_31, %c0_32] : memref<1x256xi32, #tpu.memory_space<vmem>>, vector<1x256xi32>
    %c0_i32 = arith.constant 0 : i32
    %22 = vector.broadcast %c0_i32 : i32 to vector<1x256xi32>
    %23 = arith.cmpi eq, %21, %22 : vector<1x256xi32>
    %c15_i32 = arith.constant 15 : i32
    %24 = vector.broadcast %c15_i32 : i32 to vector<1x256xi32>
    %25 = arith.cmpi eq, %21, %24 : vector<1x256xi32>
    %c241_i32 = arith.constant 241 : i32
    %26 = tpu.dynamic_rotate %0 by %c241_i32 dim 1 : vector<8x256xf32>, i32 -> vector<8x256xf32>
    %c1_i32 = arith.constant 1 : i32
    %27 = tpu.dynamic_rotate %0 by %c1_i32 dim 1 : vector<8x256xf32>, i32 -> vector<8x256xf32>
    %28 = vector.shape_cast %23 : vector<1x256xi1> to vector<1x256xi1>
    %29 = vector.broadcast %28 : vector<1x256xi1> to vector<8x256xi1>
    %30 = arith.select %29, %26, %27 : vector<8x256xi1>, vector<8x256xf32>
    %c15_i32_33 = arith.constant 15 : i32
    %31 = tpu.dynamic_rotate %0 by %c15_i32_33 dim 1 : vector<8x256xf32>, i32 -> vector<8x256xf32>
    %c255_i32 = arith.constant 255 : i32
    %32 = tpu.dynamic_rotate %0 by %c255_i32 dim 1 : vector<8x256xf32>, i32 -> vector<8x256xf32>
    %33 = vector.shape_cast %25 : vector<1x256xi1> to vector<1x256xi1>
    %34 = vector.broadcast %33 : vector<1x256xi1> to vector<8x256xi1>
    %35 = arith.select %34, %31, %32 : vector<8x256xi1>, vector<8x256xf32>
    %c16_i32 = arith.constant 16 : i32
    %36 = tpu.dynamic_rotate %30 by %c16_i32 dim 1 : vector<8x256xf32>, i32 -> vector<8x256xf32>
    %37 = vector.broadcast %1 : f32 to vector<8x256xf32>
    %38 = arith.mulf %36, %37 : vector<8x256xf32>
    %39 = vector.broadcast %10 : f32 to vector<8x256xf32>
    %40 = arith.mulf %36, %39 : vector<8x256xf32>
    %c16_i32_34 = arith.constant 16 : i32
    %41 = tpu.dynamic_rotate %0 by %c16_i32_34 dim 1 : vector<8x256xf32>, i32 -> vector<8x256xf32>
    %42 = vector.broadcast %2 : f32 to vector<8x256xf32>
    %43 = arith.mulf %41, %42 : vector<8x256xf32>
    %44 = arith.addf %38, %43 : vector<8x256xf32>
    %45 = vector.broadcast %11 : f32 to vector<8x256xf32>
    %46 = arith.mulf %41, %45 : vector<8x256xf32>
    %47 = arith.addf %40, %46 : vector<8x256xf32>
    %c16_i32_35 = arith.constant 16 : i32
    %48 = tpu.dynamic_rotate %35 by %c16_i32_35 dim 1 : vector<8x256xf32>, i32 -> vector<8x256xf32>
    %49 = vector.broadcast %3 : f32 to vector<8x256xf32>
    %50 = arith.mulf %48, %49 : vector<8x256xf32>
    %51 = arith.addf %44, %50 : vector<8x256xf32>
    %52 = vector.broadcast %12 : f32 to vector<8x256xf32>
    %53 = arith.mulf %48, %52 : vector<8x256xf32>
    %54 = arith.addf %47, %53 : vector<8x256xf32>
    %55 = vector.broadcast %4 : f32 to vector<8x256xf32>
    %56 = arith.mulf %30, %55 : vector<8x256xf32>
    %57 = arith.addf %51, %56 : vector<8x256xf32>
    %58 = vector.broadcast %13 : f32 to vector<8x256xf32>
    %59 = arith.mulf %30, %58 : vector<8x256xf32>
    %60 = arith.addf %54, %59 : vector<8x256xf32>
    %61 = vector.broadcast %5 : f32 to vector<8x256xf32>
    %62 = arith.mulf %0, %61 : vector<8x256xf32>
    %63 = arith.addf %57, %62 : vector<8x256xf32>
    %64 = vector.broadcast %14 : f32 to vector<8x256xf32>
    %65 = arith.mulf %0, %64 : vector<8x256xf32>
    %66 = arith.addf %60, %65 : vector<8x256xf32>
    %67 = vector.broadcast %6 : f32 to vector<8x256xf32>
    %68 = arith.mulf %35, %67 : vector<8x256xf32>
    %69 = arith.addf %63, %68 : vector<8x256xf32>
    %70 = vector.broadcast %15 : f32 to vector<8x256xf32>
    %71 = arith.mulf %35, %70 : vector<8x256xf32>
    %72 = arith.addf %66, %71 : vector<8x256xf32>
    %c240_i32 = arith.constant 240 : i32
    %73 = tpu.dynamic_rotate %30 by %c240_i32 dim 1 : vector<8x256xf32>, i32 -> vector<8x256xf32>
    %74 = vector.broadcast %7 : f32 to vector<8x256xf32>
    %75 = arith.mulf %73, %74 : vector<8x256xf32>
    %76 = arith.addf %69, %75 : vector<8x256xf32>
    %77 = vector.broadcast %16 : f32 to vector<8x256xf32>
    %78 = arith.mulf %73, %77 : vector<8x256xf32>
    %79 = arith.addf %72, %78 : vector<8x256xf32>
    %c240_i32_36 = arith.constant 240 : i32
    %80 = tpu.dynamic_rotate %0 by %c240_i32_36 dim 1 : vector<8x256xf32>, i32 -> vector<8x256xf32>
    %81 = vector.broadcast %8 : f32 to vector<8x256xf32>
    %82 = arith.mulf %80, %81 : vector<8x256xf32>
    %83 = arith.addf %76, %82 : vector<8x256xf32>
    %84 = vector.broadcast %17 : f32 to vector<8x256xf32>
    %85 = arith.mulf %80, %84 : vector<8x256xf32>
    %86 = arith.addf %79, %85 : vector<8x256xf32>
    %c240_i32_37 = arith.constant 240 : i32
    %87 = tpu.dynamic_rotate %35 by %c240_i32_37 dim 1 : vector<8x256xf32>, i32 -> vector<8x256xf32>
    %88 = vector.broadcast %9 : f32 to vector<8x256xf32>
    %89 = arith.mulf %87, %88 : vector<8x256xf32>
    %90 = arith.addf %83, %89 : vector<8x256xf32>
    %91 = vector.broadcast %18 : f32 to vector<8x256xf32>
    %92 = arith.mulf %87, %91 : vector<8x256xf32>
    %93 = arith.addf %86, %92 : vector<8x256xf32>
    %94 = vector.broadcast %19 : f32 to vector<8x256xf32>
    %95 = arith.addf %90, %94 : vector<8x256xf32>
    %96 = math.absf %95 : vector<8x256xf32>
    %97 = vector.broadcast %20 : f32 to vector<8x256xf32>
    %98 = arith.addf %93, %97 : vector<8x256xf32>
    %99 = math.absf %98 : vector<8x256xf32>
    %cst = arith.constant 6.000000e-01 : f32
    %100 = vector.broadcast %cst : f32 to vector<8x256xf32>
    %101 = arith.subf %100, %99 : vector<8x256xf32>
    %102 = arith.subf %99, %96 : vector<8x256xf32>
    %103 = arith.mulf %0, %102 : vector<8x256xf32>
    %104 = arith.addf %101, %103 : vector<8x256xf32>
    %105 = arith.negf %104 : vector<8x256xf32>
    %106 = math.exp %105 : vector<8x256xf32>
    %cst_38 = arith.constant 1.000000e+00 : f32
    %107 = vector.broadcast %cst_38 : f32 to vector<8x256xf32>
    %108 = arith.addf %107, %106 : vector<8x256xf32>
    %109 = arith.divf %107, %108 : vector<8x256xf32>
    %c0_39 = arith.constant 0 : index
    %c0_40 = arith.constant 0 : index
    %110 = vector.load %arg5[%c0_39, %c0_40] : memref<8x256xf32, #tpu.memory_space<vmem>>, vector<8x256xf32>
    tpu.vector_store %arg5[%c0_39, %c0_40], %109 {strides = array<i32>} : memref<8x256xf32, #tpu.memory_space<vmem>>, vector<8x256xf32>,
    return
  }
  func.func @transform_0(%arg0: i32) -> (i32, i32) {
    %c0_i32 = arith.constant 0 : i32
    %c0_i32_0 = arith.constant 0 : i32
    %c0_i32_1 = arith.constant 0 : i32
    return %c0_i32, %c0_i32_0 : i32, i32
  }
  func.func @transform_1(%arg0: i32) -> i32 {
    %c0_i32 = arith.constant 0 : i32
    %c0_i32_0 = arith.constant 0 : i32
    return %c0_i32 : i32
  }
  func.func @transform_2(%arg0: i32) -> (i32, i32) {
    %c0_i32 = arith.constant 0 : i32
    %c0_i32_0 = arith.constant 0 : i32
    %c0_i32_1 = arith.constant 0 : i32
    return %c0_i32, %c0_i32_0 : i32, i32
  }
  func.func @transform_3(%arg0: i32) -> (i32, i32) {
    %c0_i32 = arith.constant 0 : i32
    %c0_i32_0 = arith.constant 0 : i32
    return %arg0, %c0_i32 : i32, i32
  }
  func.func @transform_4(%arg0: i32) -> (i32, i32) {
    %c0_i32 = arith.constant 0 : i32
    %c0_i32_0 = arith.constant 0 : i32
    return %arg0, %c0_i32 : i32, i32
  }
}

</mosaic_0001>

<llo_original>
// kernel: tpu_custom_call.1
$region0: #{tpu_custom_call.1}
  #allocation0 [shape = 'u32[]', space=smem, size = 0x4, offset = 0x4, fixed_abs, tag = 'smem constant byte address 0x4 - core index']
  #allocation1 [shape = 'u32[72,128]{1,0:T(1,128)}', space=vmem, size = 0x9000, scoped, tag = 'internal scratch']
  %s0 = inlined_call_operand.hbm [shape: f32[2,9], index: 0, kind: input, shape index: {}]
  %s1 = inlined_call_operand.hbm [shape: f32[2], index: 1, kind: input, shape index: {}]
  %s2 = inlined_call_operand.hbm [shape: s32[1,256], index: 2, kind: input, shape index: {}]
  %s3 = inlined_call_operand.hbm [shape: f32[16,256], index: 3, kind: input, shape index: {}]
  %s4 = inlined_call_operand.hbm [shape: f32[16,256], index: 4, kind: output, shape index: {}]
  %s5 = sld [smem:[#allocation0]]
  $region65: #{tpu_custom_call.1} parent=0
    _
  %s7 = ssub.s32 1, %s5
  %s8 = scalar_select 0, %s7, %s5
  $region1: #{tpu_custom_call.1} parent=0
    #allocation2 [shape = 'u8[1024]{0}', space=smem, size = 0x400, scoped, tag = 'input window, operand 0, single buffered']
    #allocation3 [shape = 's32[2]{0}', space=sflag, size = 0x8, scoped, tag = 'scoped memory for tpu_custom_call.1']
    #allocation4 [shape = 's32[2]{0}', space=sflag, size = 0x8, scoped, tag = 'scoped memory for tpu_custom_call.1']
    #allocation5 [shape = 's32[2]{0}', space=sflag, size = 0x8, scoped, tag = 'scoped memory for tpu_custom_call.1']
    #allocation6 [shape = 'u8[512]{0}', space=smem, size = 0x200, scoped, tag = 'input window, operand 1, single buffered']
    #allocation7 [shape = 's32[1]{0}', space=sflag, size = 0x4, scoped, tag = 'scoped memory for tpu_custom_call.1']
    #allocation8 [shape = 'u8[1024]{0}', space=vmem, size = 0x400, scoped, tag = 'input window, operand 2, single buffered']
    #allocation9 [shape = 'u8[16384]{0}', space=vmem, size = 0x4000, scoped, tag = 'input window, operand 3']
    #allocation10 [shape = 's32[2]{0}', space=sflag, size = 0x8, scoped, tag = 'scoped memory for tpu_custom_call.1']
    #allocation11 [shape = 'u8[16384]{0}', space=vmem, size = 0x4000, scoped, tag = 'output window, operand 0']
    %9 = vsyncpa [#allocation5], 0
    %10 = vsyncpa [#allocation7], 0
    %11 = vsyncpa [#allocation3], 0
    %12 = vsyncpa [#allocation10], 0
    %s13 = scalar_lea.sflag [#allocation10], 1
    %14 = vsyncpa %s13, 0
    %15 = vsyncpa [#allocation4], 0
    %s16 = scalar_lea.sflag [#allocation4], 1
    %17 = vsyncpa %s16, 0
    loop: start=0, step=1, limit=4
    $region2: #{tpu_custom_call.1} parent=1 // loop_pre_header
      _
    $region3: #{tpu_custom_call.1} parent=1 // loop_header
      %s19 = sphi 0, %s23
      %p20 = scmp.ge.s32.totalorder %s19, 4
      %s27 = sphi 0, %s27
      %s29 = sphi 0, %s27
      %s30 = sphi 0, %s29
      %s44 = sphi 0, %s30
      %s48 = sphi 0, %s48
      %s50 = sphi 0, %s48
      %s51 = sphi 0, %s50
      %s65 = sphi 0, %s51
      %s69 = sphi 0, %s69
      %s71 = sphi 0, %s69
      %s72 = sphi 0, %s71
      %s86 = sphi 0, %s72
      %s92 = sphi 0, %s94
      %s95 = sphi 0, %s92
      %s96 = sphi 0, %s95
      %s112 = sphi 0, %s96
      %s118 = sphi 0, %s120
      %s121 = sphi 0, %s118
      %s122 = sphi 0, %s121
      %s138 = sphi 0, %s122
    $region4: #{tpu_custom_call.1} parent=1 // loop_header_branch
      %22 = sbr.rel (%p20) target = $region8
    $region5: #{tpu_custom_call.1} parent=1 // loop_body
      %s24 = ssub.s32 %s19, 1
      %s25 = ssub.s32 %s19, 2
      %s26 = sadd.s32 %s19, 1
      %s28 = sadd.s32 %s27, 1
      %p31 = scmp.eq.s32.totalorder %s19, 1
      %p32 = scmp.ne.s32.totalorder %s27, %s29
      %p33 = scmp.eq.s32.totalorder %s19, 0
      %p34 = por %p32, %p33
      %p35 = scmp.ne.s32.totalorder %s27, %s29
      %p36 = scmp.eq.s32.totalorder %s24, 1
      %p37 = por %p35, %p36
      %p38 = scmp.ne.s32.totalorder %s29, %s30
      %p39 = scmp.eq.s32.totalorder %s24, 0
      %p40 = por %p38, %p39
      %p41 = scmp.ne.s32.totalorder %s29, %s30
      %p42 = scmp.eq.s32.totalorder %s25, 1
      %p43 = por %p41, %p42
      %p45 = scmp.ne.s32.totalorder %s30, %s44
      %p46 = scmp.eq.s32.totalorder %s25, 0
      %p47 = por %p45, %p46
      %s49 = sadd.s32 %s48, 1
      %p52 = scmp.eq.s32.totalorder %s19, 1
      %p53 = scmp.ne.s32.totalorder %s48, %s50
      %p54 = scmp.eq.s32.totalorder %s19, 0
      %p55 = por %p53, %p54
      %p56 = scmp.ne.s32.totalorder %s48, %s50
      %p57 = scmp.eq.s32.totalorder %s24, 1
      %p58 = por %p56, %p57
      %p59 = scmp.ne.s32.totalorder %s50, %s51
      %p60 = scmp.eq.s32.totalorder %s24, 0
      %p61 = por %p59, %p60
      %p62 = scmp.ne.s32.totalorder %s50, %s51
      %p63 = scmp.eq.s32.totalorder %s25, 1
      %p64 = por %p62, %p63
      %p66 = scmp.ne.s32.totalorder %s51, %s65
      %p67 = scmp.eq.s32.totalorder %s25, 0
      %p68 = por %p66, %p67
      %s70 = sadd.s32 %s69, 1
      %p73 = scmp.eq.s32.totalorder %s19, 1
      %p74 = scmp.ne.s32.totalorder %s69, %s71
      %p75 = scmp.eq.s32.totalorder %s19, 0
      %p76 = por %p74, %p75
      %p77 = scmp.ne.s32.totalorder %s69, %s71
      %p78 = scmp.eq.s32.totalorder %s24, 1
      %p79 = por %p77, %p78
      %p80 = scmp.ne.s32.totalorder %s71, %s72
      %p81 = scmp.eq.s32.totalorder %s24, 0
      %p82 = por %p80, %p81
      %p83 = scmp.ne.s32.totalorder %s71, %s72
      %p84 = scmp.eq.s32.totalorder %s25, 1
      %p85 = por %p83, %p84
      %p87 = scmp.ne.s32.totalorder %s72, %s86
      %p88 = scmp.eq.s32.totalorder %s25, 0
      %p89 = por %p87, %p88
      %s90 = ssub.s32 %s19, %s26
      %p91 = scmp.eq.s32.totalorder %s90, 0
      %s93 = sadd.s32 %s92, 1
      %s94 = scalar_select %p91, %s92, %s93
      %p97 = pneg %p91
      %p98 = scmp.eq.s32.totalorder %s19, 1
      %p99 = por %p97, %p98
      %p100 = scmp.ne.s32.totalorder %s92, %s95
      %p101 = scmp.eq.s32.totalorder %s19, 0
      %p102 = por %p100, %p101
      %p103 = scmp.ne.s32.totalorder %s92, %s95
      %p104 = scmp.eq.s32.totalorder %s24, 1
      %p105 = por %p103, %p104
      %p106 = scmp.ne.s32.totalorder %s95, %s96
      %p107 = scmp.eq.s32.totalorder %s24, 0
      %p108 = por %p106, %p107
      %p109 = scmp.ne.s32.totalorder %s95, %s96
      %p110 = scmp.eq.s32.totalorder %s25, 1
      %p111 = por %p109, %p110
      %p113 = scmp.ne.s32.totalorder %s96, %s112
      %p114 = scmp.eq.s32.totalorder %s25, 0
      %p115 = por %p113, %p114
      %s116 = ssub.s32 %s19, %s26
      %p117 = scmp.eq.s32.totalorder %s116, 0
      %s119 = sadd.s32 %s118, 1
      %s120 = scalar_select %p117, %s118, %s119
      %p123 = pneg %p117
      %p124 = scmp.eq.s32.totalorder %s19, 1
      %p125 = por %p123, %p124
      %p126 = scmp.ne.s32.totalorder %s118, %s121
      %p127 = scmp.eq.s32.totalorder %s19, 0
      %p128 = por %p126, %p127
      %p129 = scmp.ne.s32.totalorder %s118, %s121
      %p130 = scmp.eq.s32.totalorder %s24, 1
      %p131 = por %p129, %p130
      %p132 = scmp.ne.s32.totalorder %s121, %s122
      %p133 = scmp.eq.s32.totalorder %s24, 0
      %p134 = por %p132, %p133
      %p135 = scmp.ne.s32.totalorder %s121, %s122
      %p136 = scmp.eq.s32.totalorder %s25, 1
      %p137 = por %p135, %p136
      %p139 = scmp.ne.s32.totalorder %s122, %s138
      %p140 = scmp.eq.s32.totalorder %s25, 0
      %p141 = por %p139, %p140
      %p142 = scmp.le.s32.totalorder 1, %s19
      %p143 = scmp.lt.s32.totalorder %s19, 3
      %p144 = pnand %p142, %p143
      %p145 = pneg %p144
      // Predicated region
      $region9: #{tpu_custom_call.1} parent=5 // pred_check
        _
      $region10: #{tpu_custom_call.1} parent=5 // pred_check_branch
        %147 = sbr.rel (%p144) target = $region12
      $region11: #{tpu_custom_call.1} parent=5 // pred_region
        %s148 = ssub.s32 %s19, 1
        // Predicated region
        $region13: #{tpu_custom_call.1} parent=11 // pred_check
          %p149 = pneg %p40
        $region14: #{tpu_custom_call.1} parent=11 // pred_check_branch
          %151 = sbr.rel (%p149) target = $region16
        $region15: #{tpu_custom_call.1} parent=11 // pred_region
          %153 = vsyncadd [#allocation5], 0
          %s155 = sshll.u32 %s0, 4
          %s156 = int_to_ptr.hbm [resolvable:$true] %s155
          %158 = dma.hbm_to_smem %s156, 32, [#allocation2], [#allocation5]
        $region16: #{tpu_custom_call.1} parent=11 // pred_fallthru
          _
        // Predicated region
        $region17: #{tpu_custom_call.1} parent=11 // pred_check
          %p159 = pneg %p61
        $region18: #{tpu_custom_call.1} parent=11 // pred_check_branch
          %161 = sbr.rel (%p159) target = $region20
        $region19: #{tpu_custom_call.1} parent=11 // pred_region
          %163 = vsyncadd [#allocation7], 0
          %s165 = sshll.u32 %s1, 4
          %s166 = int_to_ptr.hbm [resolvable:$true] %s165
          %168 = dma.hbm_to_smem %s166, 16, [#allocation6], [#allocation7]
        $region20: #{tpu_custom_call.1} parent=11 // pred_fallthru
          _
        // Predicated region
        $region21: #{tpu_custom_call.1} parent=11 // pred_check
          %p169 = pneg %p82
        $region22: #{tpu_custom_call.1} parent=11 // pred_check_branch
          %171 = sbr.rel (%p169) target = $region24
        $region23: #{tpu_custom_call.1} parent=11 // pred_region
          %173 = vsyncadd [#allocation3], 0
          %s175 = sshll.u32 %s2, 4
          %s176 = int_to_ptr.hbm [resolvable:$true] %s175
          %s177 = sshll.u32 [#allocation8], 4
          %s178 = int_to_ptr.vmem [resolvable:$true] %s177
          %180 = dma.hbm_to_vmem [thread:$0]  %s176, 32, %s178, [#allocation3]
        $region24: #{tpu_custom_call.1} parent=11 // pred_fallthru
          _
      $region12: #{tpu_custom_call.1} parent=5 // pred_fallthru
        _
      %p181 = scmp.lt.s32.totalorder %s19, 2
      // Predicated region
      $region25: #{tpu_custom_call.1} parent=5 // pred_check
        %p182 = pneg %p181
      $region26: #{tpu_custom_call.1} parent=5 // pred_check_branch
        %184 = sbr.rel (%p182) target = $region28
      $region27: #{tpu_custom_call.1} parent=5 // pred_region
        // Predicated region
        $region29: #{tpu_custom_call.1} parent=27 // pred_check
          %p185 = pneg %p102
        $region30: #{tpu_custom_call.1} parent=27 // pred_check_branch
          %187 = sbr.rel (%p185) target = $region32
        $region31: #{tpu_custom_call.1} parent=27 // pred_region
          %s188 = sand.u32 %s92, 1
          %s189 = scalar_lea.sflag [#allocation10], %s188
          %s190 = sand.u32 %s92, 1
          %s191 = smul.addr %s190, 16
          %s192 = scalar_lea.vmem [#allocation9], %s191
          %194 = vsyncadd %s189, 0
          %s195 = smul.addr %s19, 2
          %s196 = smul.addr %s195, 8
          %s197 = scalar_lea.hbm %s3, %s196
          %s199 = sshll.u32 %s197, 4
          %s200 = int_to_ptr.hbm [resolvable:$true] %s199
          %s201 = sshll.u32 %s192, 4
          %s202 = int_to_ptr.vmem [resolvable:$true] %s201
          %204 = dma.hbm_to_vmem [thread:$0]  %s200, 256, %s202, %s189
        $region32: #{tpu_custom_call.1} parent=27 // pred_fallthru
          _
      $region28: #{tpu_custom_call.1} parent=5 // pred_fallthru
        _
      %p205 = scmp.le.s32.totalorder 1, %s19
      %p206 = scmp.lt.s32.totalorder %s19, 3
      %p207 = pnand %p205, %p206
      %p208 = pneg %p207
      // Predicated region
      $region33: #{tpu_custom_call.1} parent=5 // pred_check
        _
      $region34: #{tpu_custom_call.1} parent=5 // pred_check_branch
        %210 = sbr.rel (%p207) target = $region36
      $region35: #{tpu_custom_call.1} parent=5 // pred_region
        %s211 = ssub.s32 %s19, 1
        // Predicated region
        $region37: #{tpu_custom_call.1} parent=35 // pred_check
          %p212 = pneg %p40
        $region38: #{tpu_custom_call.1} parent=35 // pred_check_branch
          %214 = sbr.rel (%p212) target = $region40
        $region39: #{tpu_custom_call.1} parent=35 // pred_region
          %216 = dma.done [#allocation5], 32
        $region40: #{tpu_custom_call.1} parent=35 // pred_fallthru
          _
        // Predicated region
        $region41: #{tpu_custom_call.1} parent=35 // pred_check
          %p217 = pneg %p61
        $region42: #{tpu_custom_call.1} parent=35 // pred_check_branch
          %219 = sbr.rel (%p217) target = $region44
        $region43: #{tpu_custom_call.1} parent=35 // pred_region
          %221 = dma.done [#allocation7], 16
        $region44: #{tpu_custom_call.1} parent=35 // pred_fallthru
          _
        // Predicated region
        $region45: #{tpu_custom_call.1} parent=35 // pred_check
          %p222 = pneg %p82
        $region46: #{tpu_custom_call.1} parent=35 // pred_check_branch
          %224 = sbr.rel (%p222) target = $region48
        $region47: #{tpu_custom_call.1} parent=35 // pred_region
          %226 = dma.done [#allocation3], 32
        $region48: #{tpu_custom_call.1} parent=35 // pred_fallthru
          _
        %s227 = sand.u32 %s95, 1
        %s228 = scalar_lea.sflag [#allocation10], %s227
        %s229 = sand.u32 %s95, 1
        %s230 = smul.addr %s229, 16
        %s231 = scalar_lea.vmem [#allocation9], %s230
        // Predicated region
        $region49: #{tpu_custom_call.1} parent=35 // pred_check
          %p232 = pneg %p108
        $region50: #{tpu_custom_call.1} parent=35 // pred_check_branch
          %234 = sbr.rel (%p232) target = $region52
        $region51: #{tpu_custom_call.1} parent=35 // pred_region
          %236 = dma.done %s228, 256
        $region52: #{tpu_custom_call.1} parent=35 // pred_fallthru
          _
        %237 = sfence
        %p238 = pneg %p40
        %p239 = pneg %p37
        %p240 = pneg %p61
        %p241 = pneg %p58
        %p242 = pneg %p82
        %p243 = pneg %p79
        %s244 = sand.u32 %s95, 1
        %s245 = scalar_lea.sflag [#allocation10], %s244
        %s246 = sand.u32 %s95, 1
        %s247 = smul.addr %s246, 16
        %s248 = scalar_lea.vmem [#allocation9], %s247
        %p249 = pneg %p108
        %p250 = pneg %p105
        %p251 = pneg %p134
        %p252 = pneg %p131
        %s253 = sand.u32 %s121, 1
        %s254 = scalar_lea.sflag [#allocation4], %s253
        %s255 = sand.u32 %s121, 1
        %s256 = smul.addr %s255, 16
        %s257 = scalar_lea.vmem [#allocation11], %s256
        %v258 = vld [vmem:[%s231] sm:$0xff]
        %v259 = vld [vmem:[%s231 + $0x8] sm:$0xff]
        %s260 = sld [smem:[#allocation2]]
        %s261 = sld [smem:[#allocation2 + $0x1]]
        %s262 = sld [smem:[#allocation2 + $0x2]]
        %s263 = sld [smem:[#allocation2 + $0x3]]
        %s264 = sld [smem:[#allocation2 + $0x4]]
        %s265 = sld [smem:[#allocation2 + $0x5]]
        %s266 = sld [smem:[#allocation2 + $0x6]]
        %s267 = sld [smem:[#allocation2 + $0x7]]
        %s268 = sld [smem:[#allocation2 + $0x8]]
        %s269 = sld [smem:[#allocation2 + $0x80]]
        %s270 = sld [smem:[#allocation2 + $0x81]]
        %s271 = sld [smem:[#allocation2 + $0x82]]
        %s272 = sld [smem:[#allocation2 + $0x83]]
        %s273 = sld [smem:[#allocation2 + $0x84]]
        %s274 = sld [smem:[#allocation2 + $0x85]]
        %s275 = sld [smem:[#allocation2 + $0x86]]
        %s276 = sld [smem:[#allocation2 + $0x87]]
        %s277 = sld [smem:[#allocation2 + $0x88]]
        %s278 = sld [smem:[#allocation6]]
        %s279 = sld [smem:[#allocation6 + $0x1]]
        %v280 = vld [vmem:[#allocation8] sm:$0x3]
        %vm281 = vcmp.eq.s32.totalorder %v280, 0
        %vm282 = vcmp.eq.s32.totalorder %v280, 15
        %283 = vrot.lane.b32.xlu0 %v258, 113
        %v284 = vpop.permute.xlu0 %283
        %285 = vrot.lane.b32.xlu0 %v259, 113
        %v286 = vpop.permute.xlu0 %285
        %v287 = vlaneseq
        %v288 = vand.u32 %v287, 127
        %vm289 = vcmp.lt.s32.totalorder %v288, 113
        %v290 = vsel %vm289, %v284, %v286
        %v291 = vsel %vm289, %v286, %v284
        %292 = vrot.lane.b32.xlu0 %v258, 1
        %v293 = vpop.permute.xlu0 %292
        %294 = vrot.lane.b32.xlu0 %v259, 1
        %v295 = vpop.permute.xlu0 %294
        %vm296 = vcmp.lt.s32.totalorder %v288, 1
        %v297 = vsel %vm296, %v293, %v295
        %v298 = vsel %vm296, %v295, %v293
        %v299 = vsel %vm281, 1, 0
        %v300 = vperm.slane %v299, 0
        %v301 = vperm.slane %v299, 1
        %vm302 = vcmp.eq.s32.totalorder %v300, 1
        %vm303 = vcmp.eq.s32.totalorder %v301, 1
        %v304 = vsel %vm302, %v290, %v298
        %v305 = vsel %vm303, %v291, %v297
        %306 = vrot.lane.b32.xlu0 %v258, 15
        %v307 = vpop.permute.xlu0 %306
        %308 = vrot.lane.b32.xlu0 %v259, 15
        %v309 = vpop.permute.xlu0 %308
        %vm310 = vcmp.lt.s32.totalorder %v288, 15
        %v311 = vsel %vm310, %v307, %v309
        %v312 = vsel %vm310, %v309, %v307
        %313 = vrot.lane.b32.xlu0 %v258, 127
        %v314 = vpop.permute.xlu0 %313
        %315 = vrot.lane.b32.xlu0 %v259, 127
        %v316 = vpop.permute.xlu0 %315
        %vm317 = vcmp.lt.s32.totalorder %v288, 127
        %v318 = vsel %vm317, %v314, %v316
        %v319 = vsel %vm317, %v316, %v314
        %v320 = vsel %vm282, 1, 0
        %v321 = vperm.slane %v320, 0
        %v322 = vperm.slane %v320, 1
        %vm323 = vcmp.eq.s32.totalorder %v321, 1
        %vm324 = vcmp.eq.s32.totalorder %v322, 1
        %v325 = vsel %vm323, %v312, %v318
        %v326 = vsel %vm324, %v311, %v319
        %327 = vrot.lane.b32.xlu0 %v304, 16
        %v328 = vpop.permute.xlu0 %327
        %329 = vrot.lane.b32.xlu0 %v305, 16
        %v330 = vpop.permute.xlu0 %329
        %vm331 = vcmp.lt.s32.totalorder %v288, 16
        %v332 = vsel %vm331, %v328, %v330
        %v333 = vsel %vm331, %v330, %v328
        %v334 = vstv %s260
        %v335 = vmul.f32 %v333, %v334
        %v336 = vmul.f32 %v332, %v334
        %v337 = vstv %s269
        %v338 = vmul.f32 %v333, %v337
        %v339 = vmul.f32 %v332, %v337
        %340 = vrot.lane.b32.xlu0 %v258, 16
        %v341 = vpop.permute.xlu0 %340
        %342 = vrot.lane.b32.xlu0 %v259, 16
        %v343 = vpop.permute.xlu0 %342
        %v344 = vsel %vm331, %v341, %v343
        %v345 = vsel %vm331, %v343, %v341
        %v346 = vstv %s261
        %v347 = vmul.f32 %v345, %v346
        %v348 = vmul.f32 %v344, %v346
        %v349 = vadd.f32 %v335, %v347
        %v350 = vadd.f32 %v336, %v348
        %v351 = vstv %s270
        %v352 = vmul.f32 %v345, %v351
        %v353 = vmul.f32 %v344, %v351
        %v354 = vadd.f32 %v338, %v352
        %v355 = vadd.f32 %v339, %v353
        %356 = vrot.lane.b32.xlu0 %v325, 16
        %v357 = vpop.permute.xlu0 %356
        %358 = vrot.lane.b32.xlu0 %v326, 16
        %v359 = vpop.permute.xlu0 %358
        %v360 = vsel %vm331, %v357, %v359
        %v361 = vsel %vm331, %v359, %v357
        %v362 = vstv %s262
        %v363 = vmul.f32 %v361, %v362
        %v364 = vmul.f32 %v360, %v362
        %v365 = vadd.f32 %v349, %v363
        %v366 = vadd.f32 %v350, %v364
        %v367 = vstv %s271
        %v368 = vmul.f32 %v361, %v367
        %v369 = vmul.f32 %v360, %v367
        %v370 = vadd.f32 %v354, %v368
        %v371 = vadd.f32 %v355, %v369
        %v372 = vstv %s263
        %v373 = vmul.f32 %v304, %v372
        %v374 = vmul.f32 %v305, %v372
        %v375 = vadd.f32 %v365, %v373
        %v376 = vadd.f32 %v366, %v374
        %v377 = vstv %s272
        %v378 = vmul.f32 %v304, %v377
        %v379 = vmul.f32 %v305, %v377
        %v380 = vadd.f32 %v370, %v378
        %v381 = vadd.f32 %v371, %v379
        %v382 = vstv %s264
        %v383 = vmul.f32 %v258, %v382
        %v384 = vmul.f32 %v259, %v382
        %v385 = vadd.f32 %v375, %v383
        %v386 = vadd.f32 %v376, %v384
        %v387 = vstv %s273
        %v388 = vmul.f32 %v258, %v387
        %v389 = vmul.f32 %v259, %v387
        %v390 = vadd.f32 %v380, %v388
        %v391 = vadd.f32 %v381, %v389
        %v392 = vstv %s265
        %v393 = vmul.f32 %v325, %v392
        %v394 = vmul.f32 %v326, %v392
        %v395 = vadd.f32 %v385, %v393
        %v396 = vadd.f32 %v386, %v394
        %v397 = vstv %s274
        %v398 = vmul.f32 %v325, %v397
        %v399 = vmul.f32 %v326, %v397
        %v400 = vadd.f32 %v390, %v398
        %v401 = vadd.f32 %v391, %v399
        %402 = vrot.lane.b32.xlu0 %v304, 112
        %v403 = vpop.permute.xlu0 %402
        %404 = vrot.lane.b32.xlu0 %v305, 112
        %v405 = vpop.permute.xlu0 %404
        %vm406 = vcmp.lt.s32.totalorder %v288, 112
        %v407 = vsel %vm406, %v403, %v405
        %v408 = vsel %vm406, %v405, %v403
        %v409 = vstv %s266
        %v410 = vmul.f32 %v407, %v409
        %v411 = vmul.f32 %v408, %v409
        %v412 = vadd.f32 %v395, %v410
        %v413 = vadd.f32 %v396, %v411
        %v414 = vstv %s275
        %v415 = vmul.f32 %v407, %v414
        %v416 = vmul.f32 %v408, %v414
        %v417 = vadd.f32 %v400, %v415
        %v418 = vadd.f32 %v401, %v416
        %419 = vrot.lane.b32.xlu0 %v258, 112
        %v420 = vpop.permute.xlu0 %419
        %421 = vrot.lane.b32.xlu0 %v259, 112
        %v422 = vpop.permute.xlu0 %421
        %v423 = vsel %vm406, %v420, %v422
        %v424 = vsel %vm406, %v422, %v420
        %v425 = vstv %s267
        %v426 = vmul.f32 %v423, %v425
        %v427 = vmul.f32 %v424, %v425
        %v428 = vadd.f32 %v412, %v426
        %v429 = vadd.f32 %v413, %v427
        %v430 = vstv %s276
        %v431 = vmul.f32 %v423, %v430
        %v432 = vmul.f32 %v424, %v430
        %v433 = vadd.f32 %v417, %v431
        %v434 = vadd.f32 %v418, %v432
        %435 = vrot.lane.b32.xlu0 %v325, 112
        %v436 = vpop.permute.xlu0 %435
        %437 = vrot.lane.b32.xlu0 %v326, 112
        %v438 = vpop.permute.xlu0 %437
        %v439 = vsel %vm406, %v436, %v438
        %v440 = vsel %vm406, %v438, %v436
        %v441 = vstv %s268
        %v442 = vmul.f32 %v439, %v441
        %v443 = vmul.f32 %v440, %v441
        %v444 = vadd.f32 %v428, %v442
        %v445 = vadd.f32 %v429, %v443
        %v446 = vstv %s277
        %v447 = vmul.f32 %v439, %v446
        %v448 = vmul.f32 %v440, %v446
        %v449 = vadd.f32 %v433, %v447
        %v450 = vadd.f32 %v434, %v448
        %v451 = vstv %s278
        %v452 = vadd.f32 %v444, %v451
        %v453 = vadd.f32 %v445, %v451
        %v454 = vand.u32 2147483647, %v452
        %v455 = vand.u32 2147483647, %v453
        %v456 = vstv %s279
        %v457 = vadd.f32 %v449, %v456
        %v458 = vadd.f32 %v450, %v456
        %v459 = vand.u32 2147483647, %v457
        %v460 = vand.u32 2147483647, %v458
        %v461 = vsub.f32 0.6, %v459
        %v462 = vsub.f32 0.6, %v460
        %v463 = vsub.f32 %v459, %v454
        %v464 = vsub.f32 %v460, %v455
        %v465 = vmul.f32 %v258, %v463
        %v466 = vmul.f32 %v259, %v464
        %v467 = vadd.f32 %v461, %v465
        %v468 = vadd.f32 %v462, %v466
        %v469 = vxor.u32 %v467, 2147483648
        %v470 = vxor.u32 %v468, 2147483648
        %v471 = vmul.f32 %v469, 1.442695
        %v472 = vpow.pop %v471
        %v473 = vmul.f32 %v470, 1.442695
        %v474 = vpow.pop %v473
        %v475 = vadd.f32 %v472, 1.0
        %v476 = vadd.f32 %v474, 1.0
        %v477 = vrcp.pop %v475
        %v478 = vmul.f32 %v475, %v477
        %v479 = vsub.f32 1.0, %v478
        %v480 = vmul.f32 %v477, %v479
        %v481 = vadd.f32 %v477, %v480
        %vm482 = vweird.f32 %v475
        %vm483 = vweird.f32 %v477
        %vm484 = vmor %vm482, %vm483
        %v485 = vsel %vm484, %v477, %v481
        %v486 = vand.u32 2147483647, %v475
        %vm487 = vcmp.eq.f32.partialorder %v486, 8.507059e+37
        %v488 = vand.u32 %v475, 2147483648
        %v489 = vor.u32 1.1754944e-38, %v488
        %v490 = vsel %vm487, %v489, %v485
        %v491 = vmul.f32 1.0, %v490
        %v492 = vrcp.pop %v476
        %v493 = vmul.f32 %v476, %v492
        %v494 = vsub.f32 1.0, %v493
        %v495 = vmul.f32 %v492, %v494
        %v496 = vadd.f32 %v492, %v495
        %vm497 = vweird.f32 %v476
        %vm498 = vweird.f32 %v492
        %vm499 = vmor %vm497, %vm498
        %v500 = vsel %vm499, %v492, %v496
        %v501 = vand.u32 2147483647, %v476
        %vm502 = vcmp.eq.f32.partialorder %v501, 8.507059e+37
        %v503 = vand.u32 %v476, 2147483648
        %v504 = vor.u32 1.1754944e-38, %v503
        %v505 = vsel %vm502, %v504, %v500
        %v506 = vmul.f32 1.0, %v505
        %507 = vst [vmem:[%s257] sm:$0xff] %v491
        %508 = vst [vmem:[%s257 + $0x8] sm:$0xff] %v506
        %s509 = sand.u32 %s121, 1
        %s510 = scalar_lea.sflag [#allocation4], %s509
        %s511 = sand.u32 %s121, 1
        %s512 = smul.addr %s511, 16
        %s513 = scalar_lea.vmem [#allocation11], %s512
        // Predicated region
        $region53: #{tpu_custom_call.1} parent=35 // pred_check
          %p514 = pneg %p131
        $region54: #{tpu_custom_call.1} parent=35 // pred_check_branch
          %516 = sbr.rel (%p514) target = $region56
        $region55: #{tpu_custom_call.1} parent=35 // pred_region
          %518 = vsyncadd %s510, 0
          %s519 = smul.addr %s24, 2
          %s520 = smul.addr %s519, 8
          %s521 = scalar_lea.hbm %s4, %s520
          %s523 = sshll.u32 %s513, 4
          %s524 = int_to_ptr.vmem [resolvable:$true] %s523
          %s525 = sshll.u32 %s521, 4
          %s526 = int_to_ptr.hbm [resolvable:$true] %s525
          %528 = dma.vmem_to_hbm [thread:$0]  %s524, 256, %s526, %s510
        $region56: #{tpu_custom_call.1} parent=35 // pred_fallthru
          _
      $region36: #{tpu_custom_call.1} parent=5 // pred_fallthru
        _
      %p529 = scmp.le.s32.totalorder 2, %s19
      // Predicated region
      $region57: #{tpu_custom_call.1} parent=5 // pred_check
        %p530 = pneg %p529
      $region58: #{tpu_custom_call.1} parent=5 // pred_check_branch
        %532 = sbr.rel (%p530) target = $region60
      $region59: #{tpu_custom_call.1} parent=5 // pred_region
        %s533 = ssub.s32 %s19, 2
        // Predicated region
        $region61: #{tpu_custom_call.1} parent=59 // pred_check
          %p534 = pneg %p137
        $region62: #{tpu_custom_call.1} parent=59 // pred_check_branch
          %536 = sbr.rel (%p534) target = $region64
        $region63: #{tpu_custom_call.1} parent=59 // pred_region
          %s537 = sand.u32 %s122, 1
          %s538 = scalar_lea.sflag [#allocation4], %s537
          %s539 = sand.u32 %s122, 1
          %s540 = smul.addr %s539, 16
          %s541 = scalar_lea.vmem [#allocation11], %s540
          %543 = dma.done %s538, 256
        $region64: #{tpu_custom_call.1} parent=59 // pred_fallthru
          _
      $region60: #{tpu_custom_call.1} parent=5 // pred_fallthru
        _
    $region6: #{tpu_custom_call.1} parent=1 // loop_footer
      %s23 = sadd.s32 1, %s19
    $region7: #{tpu_custom_call.1} parent=1 // loop_footer_branch
      %18 = sbr.rel target = $region3
    $region8: #{tpu_custom_call.1} parent=1 // loop_exit
      _
    %544 = vsyncpa [#allocation3], 1
    %s545 = scalar_lea.sflag [#allocation3], 1
    %546 = vsyncpa %s545, 1
    %547 = vsyncpa [#allocation10], 1
    %s548 = scalar_lea.sflag [#allocation10], 1
    %549 = vsyncpa %s548, 1
    %550 = vsyncpa [#allocation4], 1
    %s551 = scalar_lea.sflag [#allocation4], 1
    %552 = vsyncpa %s551, 1
    %553 = vsyncpa [#allocation5], 1
    %s554 = scalar_lea.sflag [#allocation5], 1
    %555 = vsyncpa %s554, 1
    %556 = vsyncpa [#allocation7], 1

</llo_original>
